<compile_context>
chip_gen: v5e
topology: v5e:2x2
jax: 0.10.0
libtpu: 0.0.40
codegen_flags: <defaults>
</compile_context>

<pallas_src>
import functools

import jax
import jax.numpy as jnp
from jax.experimental import pallas as pl
from jax.experimental.pallas import tpu as pltpu


def _round_up(n, m):
    return ((n + m - 1) // m) * m


# ----------------------------------------------------------------------------
# Kernel
# ----------------------------------------------------------------------------
def _mlp_kernel(*refs, n_mid, is_res, has_mid):
    if has_mid:
        x_ref, w0_ref, b0_ref, wm_ref, bm_ref, wo_ref, bo_ref, o_ref = refs
    else:
        x_ref, w0_ref, b0_ref, wo_ref, bo_ref, o_ref = refs
        wm_ref = bm_ref = None

    cdt = w0_ref.dtype  # matmul input dtype (bf16 by default, f32 optional)

    x = x_ref[...]
    if x.dtype != cdt:
        x = x.astype(cdt)                      # cast in-kernel, no HBM copy

    # to_hidden -> ReLU  (MXU matmul, f32 accumulate; bias+ReLU in f32 on VPU)
    h32 = jnp.dot(x, w0_ref[...], preferred_element_type=jnp.float32)
    h32 = jnp.maximum(h32 + b0_ref[...], 0.0)
    h = h32 if cdt == jnp.float32 else h32.astype(cdt)   # single live copy

    # hidden->hidden linears (n_hidden_layers - 1), statically unrolled
    for i in range(n_mid):
        out = jnp.dot(h, wm_ref[i], preferred_element_type=jnp.float32)
        out = jnp.maximum(out + bm_ref[i], 0.0)
        if is_res:
            out = out + h.astype(jnp.float32)  # residual add in f32
        h = out if cdt == jnp.float32 else out.astype(cdt)

    # output linear (no activation), narrow lane-masked store of true d_out cols
    y = jnp.dot(h, wo_ref[...], preferred_element_type=jnp.float32)
    o_ref[...] = (y + bo_ref[...]).astype(o_ref.dtype)


# ----------------------------------------------------------------------------
# One-time parameter preparation (padding + casts hoisted out of the forward)
# ----------------------------------------------------------------------------
def prepare_mlp_params(params, compute_dtype=jnp.bfloat16):
    """Pad hidden dim to a multiple of 128 and cast weights to the matmul dtype.

    Zero padding is exact: padded weight cols/rows and bias entries are 0, so
    ReLU keeps the padded hidden columns at exactly 0 through every layer.
    Run this ONCE per parameter set; `mlp_forward` takes the prepared dict.
    """
    f32 = jnp.float32
    w0, b0, wo, bo = params["w0"], params["b0"], params["wo"], params["bo"]
    n_mid = int(params["n_mid"])
    H = w0.shape[1]
    Hp = _round_up(H, 128)

    prep = {
        "w0": jnp.pad(w0.astype(compute_dtype), ((0, 0), (0, Hp - H))),
        "b0": jnp.pad(b0.astype(f32), ((0, 0), (0, Hp - H))),
        "wo": jnp.pad(wo.astype(compute_dtype), ((0, Hp - H), (0, 0))),
        "bo": bo.astype(f32),
        "n_mid": n_mid,
    }
    if n_mid > 0:
        prep["wm"] = jnp.pad(params["wm"][:n_mid].astype(compute_dtype),
                             ((0, 0), (0, Hp - H), (0, Hp - H)))
        prep["bm"] = jnp.pad(params["bm"][:n_mid].astype(f32),
                             ((0, 0), (0, 0), (0, Hp - H)))
    return prep


def _const_spec(shape, single_buffer):
    """BlockSpec for an operand that is VMEM-resident across the whole grid."""
    index_map = lambda i, _n=len(shape): (0,) * _n
    if single_buffer:
        # Constant block index -> double-buffering only wastes VMEM.
        return pl.BlockSpec(shape, index_map, pipeline_mode=pl.Buffered(1))
    return pl.BlockSpec(shape, index_map)


_SINGLE_BUFFER_WEIGHTS_OK = [None]   # tri-state cache: None / True / False


# ----------------------------------------------------------------------------
# Forward
# ----------------------------------------------------------------------------
def mlp_forward(x, prep, *, is_res=False, block_rows=1024):
    """Fused MLP forward: single Pallas kernel, 1-D batch grid."""
    w0, b0, wo, bo = prep["w0"], prep["b0"], prep["wo"], prep["bo"]
    n_mid = int(prep["n_mid"])
    has_mid = n_mid > 0

    B, d_in = x.shape
    assert w0.shape[0] == d_in, "input feature size mismatch with prepared params"
    Hp = w0.shape[1]
    d_out = wo.shape[1]
    out_dtype = x.dtype

    # ---- batch tile: multiple of 8 sublanes; >=2 grid steps when B >= 16 so
    #      both v7x TensorCores get work; big tiles amortize per-step overhead.
    if B >= 16:
        tm = min(block_rows, _round_up(pl.cdiv(B, 2), 8))
    else:
        tm = _round_up(max(B, 1), 8)
    tm = max(tm, 8)

    # ---- VMEM budget (v7x 64 MiB aware) -------------------------------------
    weight_bytes = w0.nbytes + b0.nbytes + wo.nbytes + bo.nbytes
    if has_mid:
        weight_bytes += prep["wm"].nbytes + prep["bm"].nbytes

    try:
        vmem_cap = int(pltpu.get_tpu_info().vmem_capacity_bytes) * 3 // 4
    except Exception:
        vmem_cap = 96 * 1024 * 1024

    def _vmem_needed(tm_, weight_bufs):
        act = 2 * tm_ * d_in * x.dtype.itemsize \
            + 2 * tm_ * d_out * jnp.dtype(out_dtype).itemsize
        inter = 3 * tm_ * Hp * 4          # f32 hidden intermediates + slack
        return weight_bufs * weight_bytes + act + inter

    # Shrink the batch tile if the estimate busts the cap (v7x re-budget).
    while tm > 256 and _vmem_needed(tm, 2) > vmem_cap:
        tm = _round_up(tm // 2, 8)
    # TODO(synk): if the weight stack alone exceeds VMEM, stream `wm` one layer
    #             at a time via an extra "arbitrary" grid axis (not needed here).

    grid = (pl.cdiv(B, tm),)

    flops = 2 * B * (d_in * Hp + n_mid * Hp * Hp + Hp * d_out)
    bytes_accessed = x.nbytes + weight_bytes + B * d_out * jnp.dtype(out_dtype).itemsize
    cost = pl.CostEstimate(flops=flops, transcendentals=0,
                           bytes_accessed=bytes_accessed)

    kernel = functools.partial(_mlp_kernel, n_mid=n_mid, is_res=is_res,
                               has_mid=has_mid)

    operands = [x, w0, b0]
    if has_mid:
        operands += [prep["wm"], prep["bm"]]
    operands += [wo, bo]

    def _run(single_buffer):
        wbufs = 1 if single_buffer else 2
        vmem_limit = max(min(_vmem_needed(tm, wbufs) * 5 // 4 + (2 << 20),
                             vmem_cap), 32 * 1024 * 1024)
        in_specs = [pl.BlockSpec((tm, d_in), lambda i: (i, 0)),   # activations
                    _const_spec(w0.shape, single_buffer),
                    _const_spec(b0.shape, single_buffer)]
        if has_mid:
            in_specs += [_const_spec(prep["wm"].shape, single_buffer),
                         _const_spec(prep["bm"].shape, single_buffer)]
        in_specs += [_const_spec(wo.shape, single_buffer),
                     _const_spec(bo.shape, single_buffer)]
        return pl.pallas_call(
            kernel,
            out_shape=jax.ShapeDtypeStruct((B, d_out), out_dtype),
            grid=grid,
            in_specs=in_specs,
            out_specs=pl.BlockSpec((tm, d_out), lambda i: (i, 0)),
            compiler_params=pltpu.CompilerParams(
                dimension_semantics=("parallel",),
                vmem_limit_bytes=int(vmem_limit)),
            cost_estimate=cost,
        )(*operands)

    # Prefer single-buffered constant weights; fall back if unsupported.
    if _SINGLE_BUFFER_WEIGHTS_OK[0] is not False:
        try:
            out = _run(True)
            _SINGLE_BUFFER_WEIGHTS_OK[0] = True
            return out
        except Exception:
            if _SINGLE_BUFFER_WEIGHTS_OK[0] is True:
                raise
            _SINGLE_BUFFER_WEIGHTS_OK[0] = False
    return _run(False)


# ----------------------------------------------------------------------------
# Synthetic parameters + pure-JAX reference (mirrors the PyTorch module)
# ----------------------------------------------------------------------------
def init_mlp_params(key, input_size, output_size, hidden_size=32,
                    n_hidden_layers=1, is_force_hid_smaller=False):
    """Synthetic parameters mirroring the PyTorch module's shapes/clamping."""
    if is_force_hid_smaller and hidden_size > max(output_size, input_size):
        hidden_size = max(output_size, input_size)
    elif hidden_size < min(output_size, input_size):
        hidden_size = min(output_size, input_size)

    n_mid = max(n_hidden_layers - 1, 0)
    ks = jax.random.split(key, 6)

    def _w(k, fan_in, shape):
        return jax.random.normal(k, shape, jnp.float32) * (2.0 / fan_in) ** 0.5

    def _b(k, fan_in, shape):
        return jax.random.uniform(k, shape, jnp.float32, -1.0, 1.0) / (fan_in ** 0.5)

    # Weights stored (in_features, out_features): y = x @ W + b (== x @ W_pt.T + b)
    w0 = _w(ks[0], input_size, (input_size, hidden_size))
    b0 = _b(ks[1], input_size, (1, hidden_size))
    wm = _w(ks[2], hidden_size, (n_mid, hidden_size, hidden_size))
    bm = _b(ks[3], hidden_size, (n_mid, 1, hidden_size))
    wo = _w(ks[4], hidden_size, (hidden_size, output_size))
    bo = _b(ks[5], hidden_size, (1, output_size))

    return {"w0": w0, "b0": b0, "wm": wm, "bm": bm, "wo": wo, "bo": bo,
            "n_mid": n_mid, "hidden_size": hidden_size}


def mlp_reference(x, params, *, is_res=False):
    """Pure-JAX high-precision reference mirroring the PyTorch forward."""
    hi = jax.lax.Precision.HIGHEST
    h = jnp.maximum(jnp.dot(x, params["w0"], precision=hi) + params["b0"], 0.0)
    for i in range(params["n_mid"]):
        out = jnp.maximum(jnp.dot(h, params["wm"][i], precision=hi)
                          + params["bm"][i], 0.0)
        if is_res:
            out = out + h
        h = out
    return jnp.dot(h, params["wo"], precision=hi) + params["bo"]


# ----------------------------------------------------------------------------
if __name__ == "__main__":
    key = jax.random.PRNGKey(0)
    k_x, k_p, k_p2 = jax.random.split(key, 3)

    batch, input_size, output_size, hidden_size = 8, 16, 8, 32
    x = jax.random.normal(k_x, (batch, input_size), jnp.float32)

    # --- Config A: n_hidden_layers=2 (one hidden->hidden linear) -------------
    params = init_mlp_params(k_p, input_size, output_size,
                             hidden_size=hidden_size, n_hidden_layers=2)
    ref = mlp_reference(x, params)

    prep_f32 = prepare_mlp_params(params, compute_dtype=jnp.float32)
    out_f32 = jax.block_until_ready(mlp_forward(x, prep_f32))
    assert out_f32.shape == (batch, output_size)
    assert jnp.allclose(out_f32, ref, atol=2e-2, rtol=2e-2), \
        float(jnp.max(jnp.abs(out_f32 - ref)))

    prep_bf16 = prepare_mlp_params(params, compute_dtype=jnp.bfloat16)
    out_bf16 = jax.block_until_ready(mlp_forward(x, prep_bf16))
    assert out_bf16.shape == (batch, output_size)
    assert jnp.allclose(out_bf16, ref, atol=1e-1, rtol=1e-1), \
        float(jnp.max(jnp.abs(out_bf16 - ref)))

    # Residual-connection path.
    ref_res = mlp_reference(x, params, is_res=True)
    out_res = jax.block_until_ready(mlp_forward(x, prep_f32, is_res=True))
    assert jnp.allclose(out_res, ref_res, atol=2e-2, rtol=2e-2), \
        float(jnp.max(jnp.abs(out_res - ref_res)))

    # --- Config B: n_hidden_layers=1 (no hidden->hidden linears) -------------
    params1 = init_mlp_params(k_p2, input_size, output_size,
                              hidden_size=hidden_size, n_hidden_layers=1)
    ref1 = mlp_reference(x, params1)
    out1 = jax.block_until_ready(
        mlp_forward(x, prepare_mlp_params(params1, compute_dtype=jnp.float32)))
    assert jnp.allclose(out1, ref1, atol=2e-2, rtol=2e-2), \
        float(jnp.max(jnp.abs(out1 - ref1)))

    print("KERNEL_OK")
</pallas_src>

<mosaic_0001>
module attributes {stable_mosaic.version = 11 : i64} {
  func.func @_mlp_kernel(%arg0: i32, %arg1: memref<8x16xf32, #tpu.memory_space<vmem>>, %arg2: memref<16x128xf32, #tpu.memory_space<vmem>>, %arg3: memref<1x128xf32, #tpu.memory_space<vmem>>, %arg4: memref<1x128x128xf32, #tpu.memory_space<vmem>>, %arg5: memref<1x1x128xf32, #tpu.memory_space<vmem>>, %arg6: memref<128x8xf32, #tpu.memory_space<vmem>>, %arg7: memref<1x8xf32, #tpu.memory_space<vmem>>, %arg8: memref<8x8xf32, #tpu.memory_space<vmem>>) attributes {dimension_semantics = [#tpu.dimension_semantics<parallel>], iteration_bounds = array<i64: 1>, scalar_prefetch = 0 : i64, scratch_operands = 0 : i64, tpu.core_type = #tpu.core_type<tc>, window_params = [{transform_indices = @transform_0, window_bounds = array<i64: 8, 16>}, {pipeline_mode = #tpu.pipeline_mode<synchronous>, transform_indices = @transform_1, window_bounds = array<i64: 16, 128>}, {pipeline_mode = #tpu.pipeline_mode<synchronous>, transform_indices = @transform_2, window_bounds = array<i64: 1, 128>}, {pipeline_mode = #tpu.pipeline_mode<synchronous>, transform_indices = @transform_3, window_bounds = array<i64: 1, 128, 128>}, {pipeline_mode = #tpu.pipeline_mode<synchronous>, transform_indices = @transform_4, window_bounds = array<i64: 1, 1, 128>}, {pipeline_mode = #tpu.pipeline_mode<synchronous>, transform_indices = @transform_5, window_bounds = array<i64: 128, 8>}, {pipeline_mode = #tpu.pipeline_mode<synchronous>, transform_indices = @transform_6, window_bounds = array<i64: 1, 8>}, {transform_indices = @transform_7, window_bounds = array<i64: 8, 8>}]} {
    %c0 = arith.constant 0 : index
    %c0_0 = arith.constant 0 : index
    %0 = vector.load %arg1[%c0, %c0_0] : memref<8x16xf32, #tpu.memory_space<vmem>>, vector<8x16xf32>
    %c0_1 = arith.constant 0 : index
    %c0_2 = arith.constant 0 : index
    %1 = vector.load %arg2[%c0_1, %c0_2] : memref<16x128xf32, #tpu.memory_space<vmem>>, vector<16x128xf32>
    %cst = arith.constant dense<0.000000e+00> : vector<8x128xf32>
    %2 = tpu.matmul %0, %1, %cst {dimension_numbers = #tpu.dot_dimension_numbers<[1], [0], [0], [1], [0, 0, 1, 1], [], []>} : vector<8x16xf32>, vector<16x128xf32>, vector<8x128xf32> -> vector<8x128xf32>
    %c0_3 = arith.constant 0 : index
    %c0_4 = arith.constant 0 : index
    %3 = vector.load %arg3[%c0_3, %c0_4] : memref<1x128xf32, #tpu.memory_space<vmem>>, vector<1x128xf32>
    %4 = vector.broadcast %3 : vector<1x128xf32> to vector<8x128xf32>
    %5 = arith.addf %2, %4 : vector<8x128xf32>
    %cst_5 = arith.constant 0.000000e+00 : f32
    %6 = vector.broadcast %cst_5 : f32 to vector<8x128xf32>
    %7 = arith.maximumf %5, %6 : vector<8x128xf32>
    %c0_6 = arith.constant 0 : index
    %c0_7 = arith.constant 0 : index
    %c0_8 = arith.constant 0 : index
    %8 = vector.load %arg4[%c0_6, %c0_7, %c0_8] : memref<1x128x128xf32, #tpu.memory_space<vmem>>, vector<1x128x128xf32>
    %9 = vector.shape_cast %8 : vector<1x128x128xf32> to vector<128x128xf32>
    %cst_9 = arith.constant dense<0.000000e+00> : vector<8x128xf32>
    %10 = tpu.matmul %7, %9, %cst_9 {dimension_numbers = #tpu.dot_dimension_numbers<[1], [0], [0], [1], [0, 0, 1, 1], [], []>} : vector<8x128xf32>, vector<128x128xf32>, vector<8x128xf32> -> vector<8x128xf32>
    %c0_10 = arith.constant 0 : index
    %c0_11 = arith.constant 0 : index
    %c0_12 = arith.constant 0 : index
    %11 = vector.load %arg5[%c0_10, %c0_11, %c0_12] : memref<1x1x128xf32, #tpu.memory_space<vmem>>, vector<1x1x128xf32>
    %12 = vector.shape_cast %11 : vector<1x1x128xf32> to vector<1x128xf32>
    %13 = vector.broadcast %12 : vector<1x128xf32> to vector<8x128xf32>
    %14 = arith.addf %10, %13 : vector<8x128xf32>
    %cst_13 = arith.constant 0.000000e+00 : f32
    %15 = vector.broadcast %cst_13 : f32 to vector<8x128xf32>
    %16 = arith.maximumf %14, %15 : vector<8x128xf32>
    %c0_14 = arith.constant 0 : index
    %c0_15 = arith.constant 0 : index
    %17 = vector.load %arg6[%c0_14, %c0_15] : memref<128x8xf32, #tpu.memory_space<vmem>>, vector<128x8xf32>
    %cst_16 = arith.constant dense<0.000000e+00> : vector<8x8xf32>
    %18 = tpu.matmul %16, %17, %cst_16 {dimension_numbers = #tpu.dot_dimension_numbers<[1], [0], [0], [1], [0, 0, 1, 1], [], []>} : vector<8x128xf32>, vector<128x8xf32>, vector<8x8xf32> -> vector<8x8xf32>
    %c0_17 = arith.constant 0 : index
    %c0_18 = arith.constant 0 : index
    %19 = vector.load %arg7[%c0_17, %c0_18] : memref<1x8xf32, #tpu.memory_space<vmem>>, vector<1x8xf32>
    %20 = vector.broadcast %19 : vector<1x8xf32> to vector<8x8xf32>
    %21 = arith.addf %18, %20 : vector<8x8xf32>
    %c0_19 = arith.constant 0 : index
    %c0_20 = arith.constant 0 : index
    %22 = vector.load %arg8[%c0_19, %c0_20] : memref<8x8xf32, #tpu.memory_space<vmem>>, vector<8x8xf32>
    tpu.vector_store %arg8[%c0_19, %c0_20], %21 {strides = array<i32>} : memref<8x8xf32, #tpu.memory_space<vmem>>, vector<8x8xf32>,
    return
  }
  func.func @transform_0(%arg0: i32) -> (i32, i32) {
    %c0_i32 = arith.constant 0 : i32
    %c0_i32_0 = arith.constant 0 : i32
    return %arg0, %c0_i32 : i32, i32
  }
  func.func @transform_1(%arg0: i32) -> (i32, i32) {
    %c0_i32 = arith.constant 0 : i32
    %c0_i32_0 = arith.constant 0 : i32
    %c0_i32_1 = arith.constant 0 : i32
    return %c0_i32, %c0_i32_0 : i32, i32
  }
  func.func @transform_2(%arg0: i32) -> (i32, i32) {
    %c0_i32 = arith.constant 0 : i32
    %c0_i32_0 = arith.constant 0 : i32
    %c0_i32_1 = arith.constant 0 : i32
    return %c0_i32, %c0_i32_0 : i32, i32
  }
  func.func @transform_3(%arg0: i32) -> (i32, i32, i32) {
    %c0_i32 = arith.constant 0 : i32
    %c0_i32_0 = arith.constant 0 : i32
    %c0_i32_1 = arith.constant 0 : i32
    %c0_i32_2 = arith.constant 0 : i32
    return %c0_i32, %c0_i32_0, %c0_i32_1 : i32, i32, i32
  }
  func.func @transform_4(%arg0: i32) -> (i32, i32, i32) {
    %c0_i32 = arith.constant 0 : i32
    %c0_i32_0 = arith.constant 0 : i32
    %c0_i32_1 = arith.constant 0 : i32
    %c0_i32_2 = arith.constant 0 : i32
    return %c0_i32, %c0_i32_0, %c0_i32_1 : i32, i32, i32
  }
  func.func @transform_5(%arg0: i32) -> (i32, i32) {
    %c0_i32 = arith.constant 0 : i32
    %c0_i32_0 = arith.constant 0 : i32
    %c0_i32_1 = arith.constant 0 : i32
    return %c0_i32, %c0_i32_0 : i32, i32
  }
  func.func @transform_6(%arg0: i32) -> (i32, i32) {
    %c0_i32 = arith.constant 0 : i32
    %c0_i32_0 = arith.constant 0 : i32
    %c0_i32_1 = arith.constant 0 : i32
    return %c0_i32, %c0_i32_0 : i32, i32
  }
  func.func @transform_7(%arg0: i32) -> (i32, i32) {
    %c0_i32 = arith.constant 0 : i32
    %c0_i32_0 = arith.constant 0 : i32
    return %arg0, %c0_i32 : i32, i32
  }
}

module attributes {stable_mosaic.version = 11 : i64} {
  func.func @_mlp_kernel(%arg0: i32, %arg1: memref<8x16xf32, #tpu.memory_space<vmem>>, %arg2: memref<16x128xf32, #tpu.memory_space<vmem>>, %arg3: memref<1x128xf32, #tpu.memory_space<vmem>>, %arg4: memref<1x128x128xf32, #tpu.memory_space<vmem>>, %arg5: memref<1x1x128xf32, #tpu.memory_space<vmem>>, %arg6: memref<128x8xf32, #tpu.memory_space<vmem>>, %arg7: memref<1x8xf32, #tpu.memory_space<vmem>>, %arg8: memref<8x8xf32, #tpu.memory_space<vmem>>) attributes {dimension_semantics = [#tpu.dimension_semantics<parallel>], iteration_bounds = array<i64: 1>, scalar_prefetch = 0 : i64, scratch_operands = 0 : i64, tpu.core_type = #tpu.core_type<tc>, window_params = [{transform_indices = @transform_0, window_bounds = array<i64: 8, 16>}, {pipeline_mode = #tpu.pipeline_mode<synchronous>, transform_indices = @transform_1, window_bounds = array<i64: 16, 128>}, {pipeline_mode = #tpu.pipeline_mode<synchronous>, transform_indices = @transform_2, window_bounds = array<i64: 1, 128>}, {pipeline_mode = #tpu.pipeline_mode<synchronous>, transform_indices = @transform_3, window_bounds = array<i64: 1, 128, 128>}, {pipeline_mode = #tpu.pipeline_mode<synchronous>, transform_indices = @transform_4, window_bounds = array<i64: 1, 1, 128>}, {pipeline_mode = #tpu.pipeline_mode<synchronous>, transform_indices = @transform_5, window_bounds = array<i64: 128, 8>}, {pipeline_mode = #tpu.pipeline_mode<synchronous>, transform_indices = @transform_6, window_bounds = array<i64: 1, 8>}, {transform_indices = @transform_7, window_bounds = array<i64: 8, 8>}]} {
    %c0 = arith.constant 0 : index
    %c0_0 = arith.constant 0 : index
    %0 = vector.load %arg1[%c0, %c0_0] : memref<8x16xf32, #tpu.memory_space<vmem>>, vector<8x16xf32>
    %c0_1 = arith.constant 0 : index
    %c0_2 = arith.constant 0 : index
    %1 = vector.load %arg2[%c0_1, %c0_2] : memref<16x128xf32, #tpu.memory_space<vmem>>, vector<16x128xf32>
    %cst = arith.constant dense<0.000000e+00> : vector<8x128xf32>
    %2 = tpu.matmul %0, %1, %cst {dimension_numbers = #tpu.dot_dimension_numbers<[1], [0], [0], [1], [0, 0, 1, 1], [], []>} : vector<8x16xf32>, vector<16x128xf32>, vector<8x128xf32> -> vector<8x128xf32>
    %c0_3 = arith.constant 0 : index
    %c0_4 = arith.constant 0 : index
    %3 = vector.load %arg3[%c0_3, %c0_4] : memref<1x128xf32, #tpu.memory_space<vmem>>, vector<1x128xf32>
    %4 = vector.broadcast %3 : vector<1x128xf32> to vector<8x128xf32>
    %5 = arith.addf %2, %4 : vector<8x128xf32>
    %cst_5 = arith.constant 0.000000e+00 : f32
    %6 = vector.broadcast %cst_5 : f32 to vector<8x128xf32>
    %7 = arith.maximumf %5, %6 : vector<8x128xf32>
    %c0_6 = arith.constant 0 : index
    %c0_7 = arith.constant 0 : index
    %c0_8 = arith.constant 0 : index
    %8 = vector.load %arg4[%c0_6, %c0_7, %c0_8] : memref<1x128x128xf32, #tpu.memory_space<vmem>>, vector<1x128x128xf32>
    %9 = vector.shape_cast %8 : vector<1x128x128xf32> to vector<128x128xf32>
    %cst_9 = arith.constant dense<0.000000e+00> : vector<8x128xf32>
    %10 = tpu.matmul %7, %9, %cst_9 {dimension_numbers = #tpu.dot_dimension_numbers<[1], [0], [0], [1], [0, 0, 1, 1], [], []>} : vector<8x128xf32>, vector<128x128xf32>, vector<8x128xf32> -> vector<8x128xf32>
    %c0_10 = arith.constant 0 : index
    %c0_11 = arith.constant 0 : index
    %c0_12 = arith.constant 0 : index
    %11 = vector.load %arg5[%c0_10, %c0_11, %c0_12] : memref<1x1x128xf32, #tpu.memory_space<vmem>>, vector<1x1x128xf32>
    %12 = vector.shape_cast %11 : vector<1x1x128xf32> to vector<1x128xf32>
    %13 = vector.broadcast %12 : vector<1x128xf32> to vector<8x128xf32>
    %14 = arith.addf %10, %13 : vector<8x128xf32>
    %cst_13 = arith.constant 0.000000e+00 : f32
    %15 = vector.broadcast %cst_13 : f32 to vector<8x128xf32>
    %16 = arith.maximumf %14, %15 : vector<8x128xf32>
    %c0_14 = arith.constant 0 : index
    %c0_15 = arith.constant 0 : index
    %17 = vector.load %arg6[%c0_14, %c0_15] : memref<128x8xf32, #tpu.memory_space<vmem>>, vector<128x8xf32>
    %cst_16 = arith.constant dense<0.000000e+00> : vector<8x8xf32>
    %18 = tpu.matmul %16, %17, %cst_16 {dimension_numbers = #tpu.dot_dimension_numbers<[1], [0], [0], [1], [0, 0, 1, 1], [], []>} : vector<8x128xf32>, vector<128x8xf32>, vector<8x8xf32> -> vector<8x8xf32>
    %c0_17 = arith.constant 0 : index
    %c0_18 = arith.constant 0 : index
    %19 = vector.load %arg7[%c0_17, %c0_18] : memref<1x8xf32, #tpu.memory_space<vmem>>, vector<1x8xf32>
    %20 = vector.broadcast %19 : vector<1x8xf32> to vector<8x8xf32>
    %21 = arith.addf %18, %20 : vector<8x8xf32>
    %c0_19 = arith.constant 0 : index
    %c0_20 = arith.constant 0 : index
    %22 = vector.load %arg8[%c0_19, %c0_20] : memref<8x8xf32, #tpu.memory_space<vmem>>, vector<8x8xf32>
    tpu.vector_store %arg8[%c0_19, %c0_20], %21 {strides = array<i32>} : memref<8x8xf32, #tpu.memory_space<vmem>>, vector<8x8xf32>,
    return
  }
  func.func @transform_0(%arg0: i32) -> (i32, i32) {
    %c0_i32 = arith.constant 0 : i32
    %c0_i32_0 = arith.constant 0 : i32
    return %arg0, %c0_i32 : i32, i32
  }
  func.func @transform_1(%arg0: i32) -> (i32, i32) {
    %c0_i32 = arith.constant 0 : i32
    %c0_i32_0 = arith.constant 0 : i32
    %c0_i32_1 = arith.constant 0 : i32
    return %c0_i32, %c0_i32_0 : i32, i32
  }
  func.func @transform_2(%arg0: i32) -> (i32, i32) {
    %c0_i32 = arith.constant 0 : i32
    %c0_i32_0 = arith.constant 0 : i32
    %c0_i32_1 = arith.constant 0 : i32
    return %c0_i32, %c0_i32_0 : i32, i32
  }
  func.func @transform_3(%arg0: i32) -> (i32, i32, i32) {
    %c0_i32 = arith.constant 0 : i32
    %c0_i32_0 = arith.constant 0 : i32
    %c0_i32_1 = arith.constant 0 : i32
    %c0_i32_2 = arith.constant 0 : i32
    return %c0_i32, %c0_i32_0, %c0_i32_1 : i32, i32, i32
  }
  func.func @transform_4(%arg0: i32) -> (i32, i32, i32) {
    %c0_i32 = arith.constant 0 : i32
    %c0_i32_0 = arith.constant 0 : i32
    %c0_i32_1 = arith.constant 0 : i32
    %c0_i32_2 = arith.constant 0 : i32
    return %c0_i32, %c0_i32_0, %c0_i32_1 : i32, i32, i32
  }
  func.func @transform_5(%arg0: i32) -> (i32, i32) {
    %c0_i32 = arith.constant 0 : i32
    %c0_i32_0 = arith.constant 0 : i32
    %c0_i32_1 = arith.constant 0 : i32
    return %c0_i32, %c0_i32_0 : i32, i32
  }
  func.func @transform_6(%arg0: i32) -> (i32, i32) {
    %c0_i32 = arith.constant 0 : i32
    %c0_i32_0 = arith.constant 0 : i32
    %c0_i32_1 = arith.constant 0 : i32
    return %c0_i32, %c0_i32_0 : i32, i32
  }
  func.func @transform_7(%arg0: i32) -> (i32, i32) {
    %c0_i32 = arith.constant 0 : i32
    %c0_i32_0 = arith.constant 0 : i32
    return %arg0, %c0_i32 : i32, i32
  }
}

</mosaic_0001>

<llo_original>
// kernel: tpu_custom_call.1
$region0: #{tpu_custom_call.1}
  #allocation0 [shape = 'u32[]', space=smem, size = 0x4, offset = 0x4, fixed_abs, tag = 'smem constant byte address 0x4 - core index']
  #allocation1 [shape = 'u32[72,128]{1,0:T(1,128)}', space=vmem, size = 0x9000, scoped, tag = 'internal scratch']
  %s0 = inlined_call_operand.vmem [shape: f32[8,16], index: 0, kind: input, shape index: {}]
  %s1 = inlined_call_operand.hbm [shape: f32[16,128], index: 1, kind: input, shape index: {}]
  %s2 = inlined_call_operand.vmem [shape: f32[1,128], index: 2, kind: input, shape index: {}]
  %s3 = inlined_call_operand.vmem [shape: f32[1,128,128], index: 3, kind: input, shape index: {}]
  %s4 = inlined_call_operand.vmem [shape: f32[1,1,128], index: 4, kind: input, shape index: {}]
  %s5 = inlined_call_operand.vmem [shape: f32[128,8], index: 5, kind: input, shape index: {}]
  %s6 = inlined_call_operand.vmem [shape: f32[1,8], index: 6, kind: input, shape index: {}]
  %s7 = inlined_call_operand.hbm [shape: f32[8,8], index: 7, kind: output, shape index: {}]
  %s8 = sld [smem:[#allocation0]]
  $region42: #{tpu_custom_call.1} parent=0
    _
  %s10 = ssub.s32 1, %s8
  %s11 = scalar_select 0, %s10, %s8
  $region1: #{tpu_custom_call.1} parent=0
    #allocation2 [shape = 'u8[8192]{0}', space=vmem, size = 0x2000, scoped, tag = 'input window, operand 1, single buffered']
    #allocation3 [shape = 's32[1]{0}', space=sflag, size = 0x4, scoped, tag = 'scoped memory for tpu_custom_call.1']
    #allocation4 [shape = 's32[1]{0}', space=sflag, size = 0x4, scoped, tag = 'scoped memory for tpu_custom_call.1']
    #allocation5 [shape = 'u8[4096]{0}', space=vmem, size = 0x1000, scoped, tag = 'output window, operand 0, single buffered']
    %12 = vsyncpa [#allocation3], 0
    %13 = vsyncpa [#allocation4], 0
    // Predicated region
    $region2: #{tpu_custom_call.1} parent=1 // pred_check
      _
    $region3: #{tpu_custom_call.1} parent=1 // pred_check_branch
      %15 = sbr.rel (0) target = $region5
    $region4: #{tpu_custom_call.1} parent=1 // pred_region
      _
    $region5: #{tpu_custom_call.1} parent=1 // pred_fallthru
      _
    // Predicated region
    $region6: #{tpu_custom_call.1} parent=1 // pred_check
      _
    $region7: #{tpu_custom_call.1} parent=1 // pred_check_branch
      %17 = sbr.rel (0) target = $region9
    $region8: #{tpu_custom_call.1} parent=1 // pred_region
      %19 = vsyncadd [#allocation3], 0
      %s20 = sshll.u32 %s1, 4
      %s21 = int_to_ptr.hbm [resolvable:$true] %s20
      %s22 = sshll.u32 [#allocation2], 4
      %s23 = int_to_ptr.vmem [resolvable:$true] %s22
      %28 = dma.hbm_to_vmem [thread:$0]  %s21, 256, %s23, [#allocation3], 128, 128, 8
    $region9: #{tpu_custom_call.1} parent=1 // pred_fallthru
      _
    // Predicated region
    $region10: #{tpu_custom_call.1} parent=1 // pred_check
      _
    $region11: #{tpu_custom_call.1} parent=1 // pred_check_branch
      %30 = sbr.rel (0) target = $region13
    $region12: #{tpu_custom_call.1} parent=1 // pred_region
      _
    $region13: #{tpu_custom_call.1} parent=1 // pred_fallthru
      _
    // Predicated region
    $region14: #{tpu_custom_call.1} parent=1 // pred_check
      _
    $region15: #{tpu_custom_call.1} parent=1 // pred_check_branch
      %32 = sbr.rel (0) target = $region17
    $region16: #{tpu_custom_call.1} parent=1 // pred_region
      _
    $region17: #{tpu_custom_call.1} parent=1 // pred_fallthru
      _
    // Predicated region
    $region18: #{tpu_custom_call.1} parent=1 // pred_check
      _
    $region19: #{tpu_custom_call.1} parent=1 // pred_check_branch
      %34 = sbr.rel (0) target = $region21
    $region20: #{tpu_custom_call.1} parent=1 // pred_region
      _
    $region21: #{tpu_custom_call.1} parent=1 // pred_fallthru
      _
    // Predicated region
    $region22: #{tpu_custom_call.1} parent=1 // pred_check
      _
    $region23: #{tpu_custom_call.1} parent=1 // pred_check_branch
      %36 = sbr.rel (0) target = $region25
    $region24: #{tpu_custom_call.1} parent=1 // pred_region
      _
    $region25: #{tpu_custom_call.1} parent=1 // pred_fallthru
      _
    // Predicated region
    $region26: #{tpu_custom_call.1} parent=1 // pred_check
      _
    $region27: #{tpu_custom_call.1} parent=1 // pred_check_branch
      %38 = sbr.rel (0) target = $region29
    $region28: #{tpu_custom_call.1} parent=1 // pred_region
      _
    $region29: #{tpu_custom_call.1} parent=1 // pred_fallthru
      _
    // Predicated region
    $region30: #{tpu_custom_call.1} parent=1 // pred_check
      _
    $region31: #{tpu_custom_call.1} parent=1 // pred_check_branch
      %40 = sbr.rel (0) target = $region33
    $region32: #{tpu_custom_call.1} parent=1 // pred_region
      %42 = dma.done [#allocation3], 256
    $region33: #{tpu_custom_call.1} parent=1 // pred_fallthru
      _
    %v43 = vld [vmem:[%s0] sm:$0xff]
    %v44 = vld [vmem:[#allocation2] sm:$0xff]
    %v45 = vld [vmem:[#allocation2 + $0x8] sm:$0xff]
    %v46 = vld [vmem:[%s2] sm:$0x1]
    %v48 = vperm.slane %v46, 0
    %vm50 = vcmask 130048
    %v52 = vsel %vm50, %v43, 0
    %54 = vmatpush.msra.mxu0 0.0
    %55 = vmatpush.msra.mxu0 0.0
    %56 = vmatpush.msra.mxu0 0.0
    %57 = vmatpush.msra.mxu0 0.0
    %58 = vmatpush.msra.mxu0 0.0
    %59 = vmatpush.msra.mxu0 0.0
    %60 = vmatpush.msra.mxu0 0.0
    %61 = vmatpush.msra.mxu0 0.0
    %62 = vmatpush.msra.mxu0 0.0
    %63 = vmatpush.msra.mxu0 0.0
    %64 = vmatpush.msra.mxu0 0.0
    %65 = vmatpush.msra.mxu0 0.0
    %66 = vmatpush.msra.mxu0 0.0
    %67 = vmatpush.msra.mxu0 0.0
    %68 = vmatpush.msra.mxu0 %v45
    %69 = vmatpush.msra.mxu0 %v44
    %70 = vmatmul.f32.gmra.mxu0 %v52
    %v71 = vpop.f32.mrf.mxu0
    %v72 = vadd.f32 %v48, %v71
    %73 = vdwg.mxu0
    %v74 = vmax.f32 %v72, 0.0
    %v75 = vld [vmem:[%s3] sm:$0xff]
    %v76 = vld [vmem:[%s3 + $0x8] sm:$0xff]
    %v77 = vld [vmem:[%s3 + $0x10] sm:$0xff]
    %v78 = vld [vmem:[%s3 + $0x18] sm:$0xff]
    %v79 = vld [vmem:[%s3 + $0x20] sm:$0xff]
    %v80 = vld [vmem:[%s3 + $0x28] sm:$0xff]
    %v81 = vld [vmem:[%s3 + $0x30] sm:$0xff]
    %v82 = vld [vmem:[%s3 + $0x38] sm:$0xff]
    %v83 = vld [vmem:[%s3 + $0x40] sm:$0xff]
    %v84 = vld [vmem:[%s3 + $0x48] sm:$0xff]
    %v85 = vld [vmem:[%s3 + $0x50] sm:$0xff]
    %v86 = vld [vmem:[%s3 + $0x58] sm:$0xff]
    %v87 = vld [vmem:[%s3 + $0x60] sm:$0xff]
    %v88 = vld [vmem:[%s3 + $0x68] sm:$0xff]
    %v89 = vld [vmem:[%s3 + $0x70] sm:$0xff]
    %v90 = vld [vmem:[%s3 + $0x78] sm:$0xff]
    %v91 = vld [vmem:[%s4] sm:$0x1]
    %v93 = vperm.slane %v91, 0
    %95 = vmatpush.msra.mxu0 %v90
    %96 = vmatpush.msra.mxu0 %v89
    %97 = vmatpush.msra.mxu0 %v88
    %98 = vmatpush.msra.mxu0 %v87
    %99 = vmatpush.msra.mxu0 %v86
    %100 = vmatpush.msra.mxu0 %v85
    %101 = vmatpush.msra.mxu0 %v84
    %102 = vmatpush.msra.mxu0 %v83
    %103 = vmatpush.msra.mxu0 %v82
    %104 = vmatpush.msra.mxu0 %v81
    %105 = vmatpush.msra.mxu0 %v80
    %106 = vmatpush.msra.mxu0 %v79
    %107 = vmatpush.msra.mxu0 %v78
    %108 = vmatpush.msra.mxu0 %v77
    %109 = vmatpush.msra.mxu0 %v76
    %110 = vmatpush.msra.mxu0 %v75
    %111 = vmatmul.f32.gmra.mxu0 %v74
    %v112 = vpop.f32.mrf.mxu0
    %v113 = vadd.f32 %v93, %v112
    %114 = vdwg.mxu0
    %v115 = vmax.f32 %v113, 0.0
    %v116 = vld [vmem:[%s5] sm:$0xff]
    %v117 = vld [vmem:[%s5 + $0x8] sm:$0xff]
    %v118 = vld [vmem:[%s5 + $0x10] sm:$0xff]
    %v119 = vld [vmem:[%s5 + $0x18] sm:$0xff]
    %v120 = vld [vmem:[%s5 + $0x20] sm:$0xff]
    %v121 = vld [vmem:[%s5 + $0x28] sm:$0xff]
    %v122 = vld [vmem:[%s5 + $0x30] sm:$0xff]
    %v123 = vld [vmem:[%s5 + $0x38] sm:$0xff]
    %v124 = vld [vmem:[%s5 + $0x40] sm:$0xff]
    %v125 = vld [vmem:[%s5 + $0x48] sm:$0xff]
    %v126 = vld [vmem:[%s5 + $0x50] sm:$0xff]
    %v127 = vld [vmem:[%s5 + $0x58] sm:$0xff]
    %v128 = vld [vmem:[%s5 + $0x60] sm:$0xff]
    %v129 = vld [vmem:[%s5 + $0x68] sm:$0xff]
    %v130 = vld [vmem:[%s5 + $0x70] sm:$0xff]
    %v131 = vld [vmem:[%s5 + $0x78] sm:$0xff]
    %v132 = vld [vmem:[%s6] sm:$0x1]
    %v134 = vperm.slane %v132, 0
    %136 = vmatpush.msra.mxu0 %v131
    %137 = vmatpush.msra.mxu0 %v130
    %138 = vmatpush.msra.mxu0 %v129
    %139 = vmatpush.msra.mxu0 %v128
    %140 = vmatpush.msra.mxu0 %v127
    %141 = vmatpush.msra.mxu0 %v126
    %142 = vmatpush.msra.mxu0 %v125
    %143 = vmatpush.msra.mxu0 %v124
    %144 = vmatpush.msra.mxu0 %v123
    %145 = vmatpush.msra.mxu0 %v122
    %146 = vmatpush.msra.mxu0 %v121
    %147 = vmatpush.msra.mxu0 %v120
    %148 = vmatpush.msra.mxu0 %v119
    %149 = vmatpush.msra.mxu0 %v118
    %150 = vmatpush.msra.mxu0 %v117
    %151 = vmatpush.msra.mxu0 %v116
    %152 = vmatmul.f32.gmra.mxu0 %v115
    %v153 = vpop.f32.mrf.mxu0
    %v154 = vadd.f32 %v134, %v153
    %155 = vdwg.mxu0
    %vm156 = vcmask 64512
    %157 = vst.msk [vmem:[#allocation5] sm:$0xff] %vm156, %v154
    // Predicated region
    $region34: #{tpu_custom_call.1} parent=1 // pred_check
      _
    $region35: #{tpu_custom_call.1} parent=1 // pred_check_branch
      %159 = sbr.rel (0) target = $region37
    $region36: #{tpu_custom_call.1} parent=1 // pred_region
      %161 = vsyncadd [#allocation4], 0
      %s163 = sshll.u32 [#allocation5], 4
      %s164 = int_to_ptr.vmem [resolvable:$true] %s163
      %s165 = sshll.u32 %s7, 4
      %s166 = int_to_ptr.hbm [resolvable:$true] %s165
      %168 = dma.vmem_to_hbm [thread:$0]  %s164, 128, %s166, [#allocation4]
    $region37: #{tpu_custom_call.1} parent=1 // pred_fallthru
      _
    // Predicated region
    $region38: #{tpu_custom_call.1} parent=1 // pred_check
      _
    $region39: #{tpu_custom_call.1} parent=1 // pred_check_branch
      %170 = sbr.rel (0) target = $region41
    $region40: #{tpu_custom_call.1} parent=1 // pred_region
      %172 = dma.done [#allocation4], 128
    $region41: #{tpu_custom_call.1} parent=1 // pred_fallthru
      _
    %173 = vsyncpa [#allocation3], 1
    %174 = vsyncpa [#allocation4], 1

// kernel: tpu_custom_call.1
$region0: #{tpu_custom_call.1}
  #allocation0 [shape = 'u32[]', space=smem, size = 0x4, offset = 0x4, fixed_abs, tag = 'smem constant byte address 0x4 - core index']
  #allocation1 [shape = 'u32[72,128]{1,0:T(1,128)}', space=vmem, size = 0x9000, scoped, tag = 'internal scratch']
  %s0 = inlined_call_operand.vmem [shape: f32[8,16], index: 0, kind: input, shape index: {}]
  %s1 = inlined_call_operand.hbm [shape: f32[16,128], index: 1, kind: input, shape index: {}]
  %s2 = inlined_call_operand.vmem [shape: f32[1,128], index: 2, kind: input, shape index: {}]
  %s3 = inlined_call_operand.vmem [shape: f32[1,128,128], index: 3, kind: input, shape index: {}]
  %s4 = inlined_call_operand.vmem [shape: f32[1,1,128], index: 4, kind: input, shape index: {}]
  %s5 = inlined_call_operand.vmem [shape: f32[128,8], index: 5, kind: input, shape index: {}]
  %s6 = inlined_call_operand.vmem [shape: f32[1,8], index: 6, kind: input, shape index: {}]
  %s7 = inlined_call_operand.hbm [shape: f32[8,8], index: 7, kind: output, shape index: {}]
  %s8 = sld [smem:[#allocation0]]
  $region42: #{tpu_custom_call.1} parent=0
    _
  %s10 = ssub.s32 1, %s8
  %s11 = scalar_select 0, %s10, %s8
  $region1: #{tpu_custom_call.1} parent=0
    #allocation2 [shape = 'u8[8192]{0}', space=vmem, size = 0x2000, scoped, tag = 'input window, operand 1, single buffered']
    #allocation3 [shape = 's32[1]{0}', space=sflag, size = 0x4, scoped, tag = 'scoped memory for tpu_custom_call.1']
    #allocation4 [shape = 's32[1]{0}', space=sflag, size = 0x4, scoped, tag = 'scoped memory for tpu_custom_call.1']
    #allocation5 [shape = 'u8[4096]{0}', space=vmem, size = 0x1000, scoped, tag = 'output window, operand 0, single buffered']
    %12 = vsyncpa [#allocation3], 0
    %13 = vsyncpa [#allocation4], 0
    // Predicated region
    $region2: #{tpu_custom_call.1} parent=1 // pred_check
      _
    $region3: #{tpu_custom_call.1} parent=1 // pred_check_branch
      %15 = sbr.rel (0) target = $region5
    $region4: #{tpu_custom_call.1} parent=1 // pred_region
      _
    $region5: #{tpu_custom_call.1} parent=1 // pred_fallthru
      _
    // Predicated region
    $region6: #{tpu_custom_call.1} parent=1 // pred_check
      _
    $region7: #{tpu_custom_call.1} parent=1 // pred_check_branch
      %17 = sbr.rel (0) target = $region9
    $region8: #{tpu_custom_call.1} parent=1 // pred_region
      %19 = vsyncadd [#allocation3], 0
      %s20 = sshll.u32 %s1, 4
      %s21 = int_to_ptr.hbm [resolvable:$true] %s20
      %s22 = sshll.u32 [#allocation2], 4
      %s23 = int_to_ptr.vmem [resolvable:$true] %s22
      %28 = dma.hbm_to_vmem [thread:$0]  %s21, 256, %s23, [#allocation3], 128, 128, 8
    $region9: #{tpu_custom_call.1} parent=1 // pred_fallthru
      _
    // Predicated region
    $region10: #{tpu_custom_call.1} parent=1 // pred_check
      _
    $region11: #{tpu_custom_call.1} parent=1 // pred_check_branch
      %30 = sbr.rel (0) target = $region13
    $region12: #{tpu_custom_call.1} parent=1 // pred_region
      _
    $region13: #{tpu_custom_call.1} parent=1 // pred_fallthru
      _
    // Predicated region
    $region14: #{tpu_custom_call.1} parent=1 // pred_check
      _
    $region15: #{tpu_custom_call.1} parent=1 // pred_check_branch
      %32 = sbr.rel (0) target = $region17
    $region16: #{tpu_custom_call.1} parent=1 // pred_region
      _
    $region17: #{tpu_custom_call.1} parent=1 // pred_fallthru
      _
    // Predicated region
    $region18: #{tpu_custom_call.1} parent=1 // pred_check
      _
    $region19: #{tpu_custom_call.1} parent=1 // pred_check_branch
      %34 = sbr.rel (0) target = $region21
    $region20: #{tpu_custom_call.1} parent=1 // pred_region
      _
    $region21: #{tpu_custom_call.1} parent=1 // pred_fallthru
      _
    // Predicated region
    $region22: #{tpu_custom_call.1} parent=1 // pred_check
      _
    $region23: #{tpu_custom_call.1} parent=1 // pred_check_branch
      %36 = sbr.rel (0) target = $region25
    $region24: #{tpu_custom_call.1} parent=1 // pred_region
      _
    $region25: #{tpu_custom_call.1} parent=1 // pred_fallthru
      _
    // Predicated region
    $region26: #{tpu_custom_call.1} parent=1 // pred_check
      _
    $region27: #{tpu_custom_call.1} parent=1 // pred_check_branch
      %38 = sbr.rel (0) target = $region29
    $region28: #{tpu_custom_call.1} parent=1 // pred_region
      _
    $region29: #{tpu_custom_call.1} parent=1 // pred_fallthru
      _
    // Predicated region
    $region30: #{tpu_custom_call.1} parent=1 // pred_check
      _
    $region31: #{tpu_custom_call.1} parent=1 // pred_check_branch
      %40 = sbr.rel (0) target = $region33
    $region32: #{tpu_custom_call.1} parent=1 // pred_region
      %42 = dma.done [#allocation3], 256
    $region33: #{tpu_custom_call.1} parent=1 // pred_fallthru
      _
    %v43 = vld [vmem:[%s0] sm:$0xff]
    %v44 = vld [vmem:[#allocation2] sm:$0xff]
    %v45 = vld [vmem:[#allocation2 + $0x8] sm:$0xff]
    %v46 = vld [vmem:[%s2] sm:$0x1]
    %v48 = vperm.slane %v46, 0
    %vm50 = vcmask 130048
    %v52 = vsel %vm50, %v43, 0
    %54 = vmatpush.msra.mxu0 0.0
    %55 = vmatpush.msra.mxu0 0.0
    %56 = vmatpush.msra.mxu0 0.0
    %57 = vmatpush.msra.mxu0 0.0
    %58 = vmatpush.msra.mxu0 0.0
    %59 = vmatpush.msra.mxu0 0.0
    %60 = vmatpush.msra.mxu0 0.0
    %61 = vmatpush.msra.mxu0 0.0
    %62 = vmatpush.msra.mxu0 0.0
    %63 = vmatpush.msra.mxu0 0.0
    %64 = vmatpush.msra.mxu0 0.0
    %65 = vmatpush.msra.mxu0 0.0
    %66 = vmatpush.msra.mxu0 0.0
    %67 = vmatpush.msra.mxu0 0.0
    %68 = vmatpush.msra.mxu0 %v45
    %69 = vmatpush.msra.mxu0 %v44
    %70 = vmatmul.f32.gmra.mxu0 %v52
    %v71 = vpop.f32.mrf.mxu0
    %v72 = vadd.f32 %v48, %v71
    %73 = vdwg.mxu0
    %v74 = vmax.f32 %v72, 0.0
    %v75 = vld [vmem:[%s3] sm:$0xff]
    %v76 = vld [vmem:[%s3 + $0x8] sm:$0xff]
    %v77 = vld [vmem:[%s3 + $0x10] sm:$0xff]
    %v78 = vld [vmem:[%s3 + $0x18] sm:$0xff]
    %v79 = vld [vmem:[%s3 + $0x20] sm:$0xff]
    %v80 = vld [vmem:[%s3 + $0x28] sm:$0xff]
    %v81 = vld [vmem:[%s3 + $0x30] sm:$0xff]
    %v82 = vld [vmem:[%s3 + $0x38] sm:$0xff]
    %v83 = vld [vmem:[%s3 + $0x40] sm:$0xff]
    %v84 = vld [vmem:[%s3 + $0x48] sm:$0xff]
    %v85 = vld [vmem:[%s3 + $0x50] sm:$0xff]
    %v86 = vld [vmem:[%s3 + $0x58] sm:$0xff]
    %v87 = vld [vmem:[%s3 + $0x60] sm:$0xff]
    %v88 = vld [vmem:[%s3 + $0x68] sm:$0xff]
    %v89 = vld [vmem:[%s3 + $0x70] sm:$0xff]
    %v90 = vld [vmem:[%s3 + $0x78] sm:$0xff]
    %v91 = vld [vmem:[%s4] sm:$0x1]
    %v93 = vperm.slane %v91, 0
    %95 = vmatpush.msra.mxu0 %v90
    %96 = vmatpush.msra.mxu0 %v89
    %97 = vmatpush.msra.mxu0 %v88
    %98 = vmatpush.msra.mxu0 %v87
    %99 = vmatpush.msra.mxu0 %v86
    %100 = vmatpush.msra.mxu0 %v85
    %101 = vmatpush.msra.mxu0 %v84
    %102 = vmatpush.msra.mxu0 %v83
    %103 = vmatpush.msra.mxu0 %v82
    %104 = vmatpush.msra.mxu0 %v81
    %105 = vmatpush.msra.mxu0 %v80
    %106 = vmatpush.msra.mxu0 %v79
    %107 = vmatpush.msra.mxu0 %v78
    %108 = vmatpush.msra.mxu0 %v77
    %109 = vmatpush.msra.mxu0 %v76
    %110 = vmatpush.msra.mxu0 %v75
    %111 = vmatmul.f32.gmra.mxu0 %v74
    %v112 = vpop.f32.mrf.mxu0
    %v113 = vadd.f32 %v93, %v112
    %114 = vdwg.mxu0
    %v115 = vmax.f32 %v113, 0.0
    %v116 = vld [vmem:[%s5] sm:$0xff]
    %v117 = vld [vmem:[%s5 + $0x8] sm:$0xff]
    %v118 = vld [vmem:[%s5 + $0x10] sm:$0xff]
    %v119 = vld [vmem:[%s5 + $0x18] sm:$0xff]
    %v120 = vld [vmem:[%s5 + $0x20] sm:$0xff]
    %v121 = vld [vmem:[%s5 + $0x28] sm:$0xff]
    %v122 = vld [vmem:[%s5 + $0x30] sm:$0xff]
    %v123 = vld [vmem:[%s5 + $0x38] sm:$0xff]
    %v124 = vld [vmem:[%s5 + $0x40] sm:$0xff]
    %v125 = vld [vmem:[%s5 + $0x48] sm:$0xff]
    %v126 = vld [vmem:[%s5 + $0x50] sm:$0xff]
    %v127 = vld [vmem:[%s5 + $0x58] sm:$0xff]
    %v128 = vld [vmem:[%s5 + $0x60] sm:$0xff]
    %v129 = vld [vmem:[%s5 + $0x68] sm:$0xff]
    %v130 = vld [vmem:[%s5 + $0x70] sm:$0xff]
    %v131 = vld [vmem:[%s5 + $0x78] sm:$0xff]
    %v132 = vld [vmem:[%s6] sm:$0x1]
    %v134 = vperm.slane %v132, 0
    %136 = vmatpush.msra.mxu0 %v131
    %137 = vmatpush.msra.mxu0 %v130
    %138 = vmatpush.msra.mxu0 %v129
    %139 = vmatpush.msra.mxu0 %v128
    %140 = vmatpush.msra.mxu0 %v127
    %141 = vmatpush.msra.mxu0 %v126
    %142 = vmatpush.msra.mxu0 %v125
    %143 = vmatpush.msra.mxu0 %v124
    %144 = vmatpush.msra.mxu0 %v123
    %145 = vmatpush.msra.mxu0 %v122
    %146 = vmatpush.msra.mxu0 %v121
    %147 = vmatpush.msra.mxu0 %v120
    %148 = vmatpush.msra.mxu0 %v119
    %149 = vmatpush.msra.mxu0 %v118
    %150 = vmatpush.msra.mxu0 %v117
    %151 = vmatpush.msra.mxu0 %v116
    %152 = vmatmul.f32.gmra.mxu0 %v115
    %v153 = vpop.f32.mrf.mxu0
    %v154 = vadd.f32 %v134, %v153
    %155 = vdwg.mxu0
    %vm156 = vcmask 64512
    %157 = vst.msk [vmem:[#allocation5] sm:$0xff] %vm156, %v154
    // Predicated region
    $region34: #{tpu_custom_call.1} parent=1 // pred_check
      _
    $region35: #{tpu_custom_call.1} parent=1 // pred_check_branch
      %159 = sbr.rel (0) target = $region37
    $region36: #{tpu_custom_call.1} parent=1 // pred_region
      %161 = vsyncadd [#allocation4], 0
      %s163 = sshll.u32 [#allocation5], 4
      %s164 = int_to_ptr.vmem [resolvable:$true] %s163
      %s165 = sshll.u32 %s7, 4
      %s166 = int_to_ptr.hbm [resolvable:$true] %s165
      %168 = dma.vmem_to_hbm [thread:$0]  %s164, 128, %s166, [#allocation4]
    $region37: #{tpu_custom_call.1} parent=1 // pred_fallthru
      _
    // Predicated region
    $region38: #{tpu_custom_call.1} parent=1 // pred_check
      _
    $region39: #{tpu_custom_call.1} parent=1 // pred_check_branch
      %170 = sbr.rel (0) target = $region41
    $region40: #{tpu_custom_call.1} parent=1 // pred_region
      %172 = dma.done [#allocation4], 128
    $region41: #{tpu_custom_call.1} parent=1 // pred_fallthru
      _
    %173 = vsyncpa [#allocation3], 1
    %174 = vsyncpa [#allocation4], 1

</llo_original>
